<compile_context>
chip_gen: v6e
topology: v6e:2x2x1
jax: 0.10.0
libtpu: 0.0.40
codegen_flags: <defaults>
</compile_context>

<pallas_src>
import jax
import jax.numpy as jnp
from jax.experimental import pallas as pl
from jax.experimental.pallas import tpu as pltpu

BN_EPS = 1e-5


def _choose_tile_rows(n, h, itemsize, target_bytes=2 * 1024 * 1024):
    """Pick a batch-tile row count: ~2 MiB per tile, multiple of 8, capped at N."""
    rows = target_bytes // max(1, h * itemsize)
    rows = max(8, (rows // 8) * 8)
    if n <= rows:
        return int(n)      # single full-extent block (always a legal block shape)
    return int(rows)       # multiple of 8, strictly < n


def _uni_rnn_mapping_kernel(scalars_ref, x_ref, w_ref, o_ref, z_buf, s_ref):
    # scalars_ref: (3,)       f32 SMEM   [linear bias, bn gamma, bn beta]
    # x_ref:       (TN, H)    native-dtype VMEM (one batch tile)
    # w_ref:       (1, H)     VMEM (PyTorch Linear weight layout, out_features=1)
    # o_ref:       (N, 1)     f32 VMEM, resident across the grid, written on last step
    # z_buf:       (G*TN, 1)  f32 VMEM scratch (all pre-BN activations)
    # s_ref:       (1, 1)     f32 VMEM scratch (running sum of valid z)
    i = pl.program_id(0)
    tn = x_ref.shape[0]
    n = o_ref.shape[0]

    @pl.when(i == 0)
    def _init():
        s_ref[...] = jnp.zeros_like(s_ref)

    x = x_ref[...].astype(jnp.float32)          # upcast after the (cheaper) load
    w = w_ref[...].astype(jnp.float32)
    b = scalars_ref[0]

    # Linear(hidden_dim, 1): z = x @ W^T + b  -> (TN, 1). VPU multiply + lane reduce.
    z = jnp.sum(x * w, axis=-1, keepdims=True) + b

    # Rows past the true batch size (ragged last tile) must not pollute the stats.
    row = i * tn + jax.lax.broadcasted_iota(jnp.int32, (tn, 1), 0)
    z_valid = jnp.where(row < n, z, 0.0)

    start = pl.multiple_of(i * tn, 8)
    z_buf[pl.ds(start, tn), :] = z
    s_ref[...] += jnp.sum(z_valid, axis=0, keepdims=True)

    @pl.when(i == pl.num_programs(0) - 1)
    def _finalize():
        inv_n = 1.0 / float(n)
        mean = s_ref[...] * inv_n                    # (1, 1)
        z_all = z_buf[pl.ds(0, n), :]                # (N, 1), static slice in VMEM
        diff = z_all - mean
        var = jnp.sum(diff * diff, axis=0, keepdims=True) * inv_n   # biased var
        inv_std = jax.lax.rsqrt(var + BN_EPS)
        gamma = scalars_ref[1]
        beta = scalars_ref[2]
        o_ref[...] = (diff * inv_std * gamma + beta).astype(o_ref.dtype)


def uni_rnn_mapping_forward(x, w, b, gamma, beta, *, tile_rows=None):
    """x: (N, H) float array (any float dtype). w: (1, H). b/gamma/beta: (1,).

    Returns the (N, 1) float32 output of Linear(H, 1) -> BatchNorm1d(1) (training mode).
    NB: like PyTorch's training-mode BatchNorm1d, N == 1 is degenerate (var == 0).
    """
    n, h = x.shape
    assert w.shape == (1, h)
    if tile_rows is None:
        tile_rows = _choose_tile_rows(n, h, jnp.dtype(x.dtype).itemsize)
    tn = int(tile_rows)
    assert tn == n or (tn % 8 == 0 and tn <= n), \
        "tile_rows must equal N or be a multiple of 8 that is <= N"
    g = (n + tn - 1) // tn

    scalars = jnp.concatenate(
        [b.reshape(-1), gamma.reshape(-1), beta.reshape(-1)]
    ).astype(jnp.float32)                              # (3,) -> SMEM

    return pl.pallas_call(
        _uni_rnn_mapping_kernel,
        out_shape=jax.ShapeDtypeStruct((n, 1), jnp.float32),
        grid=(g,),
        in_specs=[
            pl.BlockSpec(memory_space=pltpu.MemorySpace.SMEM),   # packed scalars
            pl.BlockSpec((tn, h), lambda i: (i, 0)),             # x tile (native dtype)
            pl.BlockSpec((1, h), lambda i: (0, 0)),              # weight (resident)
        ],
        out_specs=pl.BlockSpec((n, 1), lambda i: (0, 0)),        # resident, written last
        scratch_shapes=[
            pltpu.VMEM((g * tn, 1), jnp.float32),                # z_buf
            pltpu.VMEM((1, 1), jnp.float32),                     # running sum
        ],
        compiler_params=pltpu.CompilerParams(
            dimension_semantics=("arbitrary",)),
    )(scalars, x, w)


def _reference(x, w, b, gamma, beta):
    z = x.astype(jnp.float32) @ w.T + b[None, :]        # (N, 1)
    mean = jnp.mean(z, axis=0, keepdims=True)
    var = jnp.mean((z - mean) ** 2, axis=0, keepdims=True)
    return (z - mean) / jnp.sqrt(var + BN_EPS) * gamma + beta


if __name__ == "__main__":
    key = jax.random.PRNGKey(0)
    kx, kw, kb, kx2 = jax.random.split(key, 4)

    # Small shapes consistent with the module: batch=8, hidden_dim=32.
    N, H = 8, 32
    x = jax.random.normal(kx, (N, H), dtype=jnp.float32)

    # Deterministic parameter init mirroring PyTorch defaults:
    #   Linear: U(-1/sqrt(H), 1/sqrt(H)) for weight and bias
    #   BatchNorm1d: weight=1, bias=0
    bound = 1.0 / jnp.sqrt(jnp.float32(H))
    w = jax.random.uniform(kw, (1, H), jnp.float32, -bound, bound)
    b = jax.random.uniform(kb, (1,), jnp.float32, -bound, bound)
    gamma = jnp.ones((1,), jnp.float32)
    beta = jnp.zeros((1,), jnp.float32)

    out = jax.block_until_ready(uni_rnn_mapping_forward(x, w, b, gamma, beta))
    ref = _reference(x, w, b, gamma, beta)
    assert out.shape == (N, 1)
    assert jnp.allclose(out, ref, atol=1e-5, rtol=1e-5), (out, ref)

    # Exercise the tiled/streaming path: multi-step grid + ragged last tile.
    N2 = 300
    x2 = jax.random.normal(kx2, (N2, H), dtype=jnp.float32)
    out2 = jax.block_until_ready(
        uni_rnn_mapping_forward(x2, w, b, gamma, beta, tile_rows=128))
    ref2 = _reference(x2, w, b, gamma, beta)
    assert out2.shape == (N2, 1)
    assert jnp.allclose(out2, ref2, atol=1e-4, rtol=1e-4)

    # Native-dtype (bf16) input path: wrapper does not cast x; kernel upcasts
    # after the load (halves HBM traffic on the dominant operand).
    x2_bf16 = x2.astype(jnp.bfloat16)
    out3 = jax.block_until_ready(
        uni_rnn_mapping_forward(x2_bf16, w, b, gamma, beta, tile_rows=128))
    ref3 = _reference(x2_bf16, w, b, gamma, beta)
    assert jnp.allclose(out3, ref3, atol=1e-3, rtol=1e-3)

    print("KERNEL_OK")
</pallas_src>

<mosaic_0001>
module attributes {stable_mosaic.version = 11 : i64} {
  func.func @_uni_rnn_mapping_kernel(%arg0: i32, %arg1: memref<3xf32, #tpu.memory_space<smem>>, %arg2: memref<8x32xf32, #tpu.memory_space<vmem>>, %arg3: memref<1x32xf32, #tpu.memory_space<vmem>>, %arg4: memref<8x1xf32, #tpu.memory_space<vmem>>, %arg5: memref<8x1xf32, #tpu.memory_space<vmem>>, %arg6: memref<1x1xf32, #tpu.memory_space<vmem>>) attributes {dimension_semantics = [#tpu.dimension_semantics<arbitrary>], iteration_bounds = array<i64: 1>, scalar_prefetch = 0 : i64, scratch_operands = 2 : i64, tpu.core_type = #tpu.core_type<tc>, window_params = [{transform_indices = @transform_0, window_bounds = array<i64: 3>}, {transform_indices = @transform_1, window_bounds = array<i64: 8, 32>}, {pipeline_mode = #tpu.pipeline_mode<synchronous>, transform_indices = @transform_2, window_bounds = array<i64: 1, 32>}, {pipeline_mode = #tpu.pipeline_mode<synchronous>, transform_indices = @transform_3, window_bounds = array<i64: 8, 1>}]} {
    %c0_i32 = arith.constant 0 : i32
    %0 = arith.cmpi eq, %arg0, %c0_i32 : i32
    %1 = arith.extui %0 : i1 to i32
    %c0_i32_0 = arith.constant 0 : i32
    %2 = arith.cmpi ne, %1, %c0_i32_0 : i32
    scf.if %2 {
      %cst_16 = arith.constant 0.000000e+00 : f32
      %32 = vector.broadcast %cst_16 : f32 to vector<1x1xf32>
      %c0_17 = arith.constant 0 : index
      %c0_18 = arith.constant 0 : index
      %33 = vector.load %arg6[%c0_17, %c0_18] : memref<1x1xf32, #tpu.memory_space<vmem>>, vector<1x1xf32>
      tpu.vector_store %arg6[%c0_17, %c0_18], %32 {strides = array<i32>} : memref<1x1xf32, #tpu.memory_space<vmem>>, vector<1x1xf32>,
    } else {
    }
    %c0 = arith.constant 0 : index
    %c0_1 = arith.constant 0 : index
    %3 = vector.load %arg2[%c0, %c0_1] : memref<8x32xf32, #tpu.memory_space<vmem>>, vector<8x32xf32>
    %c0_2 = arith.constant 0 : index
    %c0_3 = arith.constant 0 : index
    %4 = vector.load %arg3[%c0_2, %c0_3] : memref<1x32xf32, #tpu.memory_space<vmem>>, vector<1x32xf32>
    %c0_4 = arith.constant 0 : index
    %5 = memref.load %arg1[%c0_4] : memref<3xf32, #tpu.memory_space<smem>>
    %6 = vector.broadcast %4 : vector<1x32xf32> to vector<8x32xf32>
    %7 = arith.mulf %3, %6 : vector<8x32xf32>
    %cst = arith.constant dense<0.000000e+00> : vector<8xf32>
    %8 = vector.multi_reduction <add>, %7, %cst [1] : vector<8x32xf32> to vector<8xf32>
    %9 = vector.shape_cast %8 : vector<8xf32> to vector<8x1xf32>
    %10 = vector.broadcast %5 : f32 to vector<8x1xf32>
    %11 = arith.addf %9, %10 : vector<8x1xf32>
    %c8_i32 = arith.constant 8 : i32
    %12 = arith.muli %arg0, %c8_i32 : i32
    %13 = tpu.iota {dimensions = array<i32: 0>} : vector<8x1xi32>
    %14 = vector.broadcast %12 : i32 to vector<8x1xi32>
    %15 = arith.addi %14, %13 : vector<8x1xi32>
    %c8_i32_5 = arith.constant 8 : i32
    %16 = vector.broadcast %c8_i32_5 : i32 to vector<8x1xi32>
    %17 = arith.cmpi slt, %15, %16 : vector<8x1xi32>
    %cst_6 = arith.constant 0.000000e+00 : f32
    %18 = vector.broadcast %cst_6 : f32 to vector<8x1xf32>
    %19 = arith.select %17, %11, %18 : vector<8x1xi1>, vector<8x1xf32>
    %c8_i32_7 = arith.constant 8 : i32
    %20 = arith.muli %arg0, %c8_i32_7 : i32
    %21 = tpu.assume_multiple %20, 8 : i32
    %22 = arith.index_cast %21 : i32 to index
    %c0_8 = arith.constant 0 : index
    %23 = vector.load %arg5[%22, %c0_8] : memref<8x1xf32, #tpu.memory_space<vmem>>, vector<8x1xf32>
    tpu.vector_store %arg5[%22, %c0_8], %11 {strides = array<i32>} : memref<8x1xf32, #tpu.memory_space<vmem>>, vector<8x1xf32>,
    %c0_9 = arith.constant 0 : index
    %c0_10 = arith.constant 0 : index
    %24 = vector.load %arg6[%c0_9, %c0_10] : memref<1x1xf32, #tpu.memory_space<vmem>>, vector<1x1xf32>
    %cst_11 = arith.constant dense<0.000000e+00> : vector<1xf32>
    %25 = vector.multi_reduction <add>, %19, %cst_11 [0] : vector<8x1xf32> to vector<1xf32>
    %26 = vector.shape_cast %25 : vector<1xf32> to vector<1x1xf32>
    %27 = arith.addf %24, %26 : vector<1x1xf32>
    %c0_12 = arith.constant 0 : index
    %c0_13 = arith.constant 0 : index
    %28 = vector.load %arg6[%c0_12, %c0_13] : memref<1x1xf32, #tpu.memory_space<vmem>>, vector<1x1xf32>
    tpu.vector_store %arg6[%c0_12, %c0_13], %27 {strides = array<i32>} : memref<1x1xf32, #tpu.memory_space<vmem>>, vector<1x1xf32>,
    %c0_i32_14 = arith.constant 0 : i32
    %29 = arith.cmpi eq, %arg0, %c0_i32_14 : i32
    %30 = arith.extui %29 : i1 to i32
    %c0_i32_15 = arith.constant 0 : i32
    %31 = arith.cmpi ne, %30, %c0_i32_15 : i32
    scf.if %31 {
      %c0_16 = arith.constant 0 : index
      %c0_17 = arith.constant 0 : index
      %32 = vector.load %arg6[%c0_16, %c0_17] : memref<1x1xf32, #tpu.memory_space<vmem>>, vector<1x1xf32>
      %cst_18 = arith.constant 1.250000e-01 : f32
      %33 = vector.broadcast %cst_18 : f32 to vector<1x1xf32>
      %34 = arith.mulf %32, %33 : vector<1x1xf32>
      %c0_19 = arith.constant 0 : index
      %c0_20 = arith.constant 0 : index
      %35 = vector.load %arg5[%c0_19, %c0_20] : memref<8x1xf32, #tpu.memory_space<vmem>>, vector<8x1xf32>
      %36 = vector.broadcast %34 : vector<1x1xf32> to vector<8x1xf32>
      %37 = arith.subf %35, %36 : vector<8x1xf32>
      %38 = arith.mulf %37, %37 : vector<8x1xf32>
      %cst_21 = arith.constant dense<0.000000e+00> : vector<1xf32>
      %39 = vector.multi_reduction <add>, %38, %cst_21 [0] : vector<8x1xf32> to vector<1xf32>
      %40 = vector.shape_cast %39 : vector<1xf32> to vector<1x1xf32>
      %cst_22 = arith.constant 1.250000e-01 : f32
      %41 = vector.broadcast %cst_22 : f32 to vector<1x1xf32>
      %42 = arith.mulf %40, %41 : vector<1x1xf32>
      %cst_23 = arith.constant 9.99999974E-6 : f32
      %43 = vector.broadcast %cst_23 : f32 to vector<1x1xf32>
      %44 = arith.addf %42, %43 : vector<1x1xf32>
      %45 = math.rsqrt %44 : vector<1x1xf32>
      %c1 = arith.constant 1 : index
      %46 = memref.load %arg1[%c1] : memref<3xf32, #tpu.memory_space<smem>>
      %c2 = arith.constant 2 : index
      %47 = memref.load %arg1[%c2] : memref<3xf32, #tpu.memory_space<smem>>
      %48 = vector.broadcast %45 : vector<1x1xf32> to vector<8x1xf32>
      %49 = arith.mulf %37, %48 : vector<8x1xf32>
      %50 = vector.broadcast %46 : f32 to vector<8x1xf32>
      %51 = arith.mulf %49, %50 : vector<8x1xf32>
      %52 = vector.broadcast %47 : f32 to vector<8x1xf32>
      %53 = arith.addf %51, %52 : vector<8x1xf32>
      %c0_24 = arith.constant 0 : index
      %c0_25 = arith.constant 0 : index
      %54 = vector.load %arg4[%c0_24, %c0_25] : memref<8x1xf32, #tpu.memory_space<vmem>>, vector<8x1xf32>
      tpu.vector_store %arg4[%c0_24, %c0_25], %53 {strides = array<i32>} : memref<8x1xf32, #tpu.memory_space<vmem>>, vector<8x1xf32>,
    } else {
    }
    return
  }
  func.func @transform_0(%arg0: i32) -> i32 {
    %c0_i32 = arith.constant 0 : i32
    %c0_i32_0 = arith.constant 0 : i32
    return %c0_i32 : i32
  }
  func.func @transform_1(%arg0: i32) -> (i32, i32) {
    %c0_i32 = arith.constant 0 : i32
    %c0_i32_0 = arith.constant 0 : i32
    return %arg0, %c0_i32 : i32, i32
  }
  func.func @transform_2(%arg0: i32) -> (i32, i32) {
    %c0_i32 = arith.constant 0 : i32
    %c0_i32_0 = arith.constant 0 : i32
    %c0_i32_1 = arith.constant 0 : i32
    return %c0_i32, %c0_i32_0 : i32, i32
  }
  func.func @transform_3(%arg0: i32) -> (i32, i32) {
    %c0_i32 = arith.constant 0 : i32
    %c0_i32_0 = arith.constant 0 : i32
    %c0_i32_1 = arith.constant 0 : i32
    return %c0_i32, %c0_i32_0 : i32, i32
  }
}

</mosaic_0001>

<llo_original>
// kernel: tpu_custom_call.1
$region0: #{tpu_custom_call.1}
  #allocation0 [shape = 'u32[]', space=smem, size = 0x4, offset = 0x4, fixed_abs, tag = 'smem constant byte address 0x4 - core index']
  #allocation1 [shape = 'u32[144,128]{1,0:T(1,128)}', space=vmem, size = 0x12000, scoped, tag = 'internal scratch']
  #allocation2 [shape = 'f32[8,1]{1,0:T(8,128)}', space=vmem, size = 0x1000, scoped, tag = 'scratch operand']
  #allocation3 [shape = 'f32[1,1]{1,0:T(1,128)}', space=vmem, size = 0x200, scoped, tag = 'scratch operand']
  %s0 = inlined_call_operand.hbm [shape: f32[3], index: 0, kind: input, shape index: {}]
  %s1 = inlined_call_operand.hbm [shape: f32[8,32], index: 1, kind: input, shape index: {}]
  %s2 = inlined_call_operand.vmem [shape: f32[1,32], index: 2, kind: input, shape index: {}]
  %s3 = inlined_call_operand.vmem [shape: f32[8,1], index: 3, kind: output, shape index: {}]
  %s4 = sld [smem:[#allocation0]]
  $region38: #{tpu_custom_call.1} parent=0
    _
  %s6 = ssub.s32 1, %s4
  %s7 = scalar_select 0, %s6, %s4
  $region1: #{tpu_custom_call.1} parent=0
    #allocation4 [shape = 'u8[512]{0}', space=smem, size = 0x200, scoped, tag = 'input window, operand 0, single buffered']
    #allocation5 [shape = 's32[1]{0}', space=sflag, size = 0x4, scoped, tag = 'scoped memory for tpu_custom_call.1']
    #allocation6 [shape = 's32[1]{0}', space=sflag, size = 0x4, scoped, tag = 'scoped memory for tpu_custom_call.1']
    #allocation7 [shape = 'u8[4096]{0}', space=vmem, size = 0x1000, scoped, tag = 'input window, operand 1, single buffered']
    %8 = vsyncpa [#allocation6], 0
    %9 = vsyncpa [#allocation5], 0
    // Predicated region
    $region2: #{tpu_custom_call.1} parent=1 // pred_check
      _
    $region3: #{tpu_custom_call.1} parent=1 // pred_check_branch
      %11 = sbr.rel (0) target = $region5
    $region4: #{tpu_custom_call.1} parent=1 // pred_region
      %s13 = ssub.s32 16, 16
      %14 = vsyncadd [#allocation6], %s13
      %17 = dma.hbm_to_smem %s0, 16, [#allocation4], [#allocation6]
    $region5: #{tpu_custom_call.1} parent=1 // pred_fallthru
      _
    // Predicated region
    $region6: #{tpu_custom_call.1} parent=1 // pred_check
      _
    $region7: #{tpu_custom_call.1} parent=1 // pred_check_branch
      %19 = sbr.rel (0) target = $region9
    $region8: #{tpu_custom_call.1} parent=1 // pred_region
      %s21 = ssub.s32 128, 128
      %22 = vsyncadd [#allocation5], %s21
      %s24 = sshll.u32 [#allocation7], 4
      %s25 = int_to_ptr.vmem [resolvable:$true] %s24
      %27 = dma.hbm_to_vmem [thread:$0]  %s1, 128, %s25, [#allocation5]
    $region9: #{tpu_custom_call.1} parent=1 // pred_fallthru
      _
    // Predicated region
    $region10: #{tpu_custom_call.1} parent=1 // pred_check
      _
    $region11: #{tpu_custom_call.1} parent=1 // pred_check_branch
      %29 = sbr.rel (0) target = $region13
    $region12: #{tpu_custom_call.1} parent=1 // pred_region
      _
    $region13: #{tpu_custom_call.1} parent=1 // pred_fallthru
      _
    // Predicated region
    $region14: #{tpu_custom_call.1} parent=1 // pred_check
      _
    $region15: #{tpu_custom_call.1} parent=1 // pred_check_branch
      %31 = sbr.rel (0) target = $region17
    $region16: #{tpu_custom_call.1} parent=1 // pred_region
      %32 = dma.done [#allocation6], 16
    $region17: #{tpu_custom_call.1} parent=1 // pred_fallthru
      _
    // Predicated region
    $region18: #{tpu_custom_call.1} parent=1 // pred_check
      _
    $region19: #{tpu_custom_call.1} parent=1 // pred_check_branch
      %34 = sbr.rel (0) target = $region21
    $region20: #{tpu_custom_call.1} parent=1 // pred_region
      %35 = dma.done [#allocation5], 128
    $region21: #{tpu_custom_call.1} parent=1 // pred_fallthru
      _
    %36 = sfence
    %p37 = scmp.eq.s32.totalorder 0, 0
    // Predicated region
    $region22: #{tpu_custom_call.1} parent=1 // pred_check
      %p38 = pneg %p37
    $region23: #{tpu_custom_call.1} parent=1 // pred_check_branch
      %40 = sbr.rel (%p38) target = $region25
    $region24: #{tpu_custom_call.1} parent=1 // pred_region
      %vm41 = vcmask 0
      %42 = vst.msk [vmem:[#allocation3] sm:$0x1] %vm41, 0.0
    $region25: #{tpu_custom_call.1} parent=1 // pred_fallthru
      _
    %v43 = vld [vmem:[#allocation7] sm:$0xff]
    %v44 = vld [vmem:[%s2] sm:$0x1]
    %s45 = sld [smem:[#allocation4]]
    %v47 = vlaneseq
    %v48 = vshrl.u32 %v47, 7
    %v49 = vsub.s32 0, %v48
    %v50 = vrot.slane %v44, %v49
    %v52 = vmul.f32 %v43, %v50
    %vm53 = vcmask 261120
    %v54 = vsel %vm53, %v52, 0.0
    %55 = vadd.xlane.f32.xlu0 %v54
    %v56 = vpop.xlane.xlu0 %55
    %v57 = vstv %s45
    %v58 = vadd.f32 %v56, %v57
    %s59 = smul.u32 0, 8
    %v60 = vlaneseq
    %v61 = vshrl.u32 %v60, 7
    %v62 = vstv %s59
    %v63 = vadd.s32 %v62, %v61
    %vm64 = vcmp.lt.s32.totalorder %v63, 8
    %v65 = vsel %vm64, %v58, 0.0
    %s66 = scalar_lea.vmem [#allocation2], %s59
    %vm67 = vcmask 7168
    %68 = vst.msk [vmem:[%s66] sm:$0xff] %vm67, %v58
    %v69 = vld [vmem:[#allocation3] sm:$0x1]
    %v70 = vrot.slane %v65, 4
    %v71 = vadd.f32 %v65, %v70
    %v72 = vrot.slane %v71, 2
    %v73 = vadd.f32 %v71, %v72
    %v74 = vrot.slane %v73, 1
    %v75 = vadd.f32 %v73, %v74
    %v76 = vadd.f32 %v69, %v75
    %vm77 = vcmask 0
    %78 = vst.msk [vmem:[#allocation3] sm:$0x1] %vm77, %v76
    // Predicated region
    $region26: #{tpu_custom_call.1} parent=1 // pred_check
      %p79 = pneg %p37
    $region27: #{tpu_custom_call.1} parent=1 // pred_check_branch
      %81 = sbr.rel (%p79) target = $region29
    $region28: #{tpu_custom_call.1} parent=1 // pred_region
      %v82 = vld [vmem:[#allocation3] sm:$0x1]
      %v83 = vmul.f32 %v82, 0.125
      %v84 = vld [vmem:[#allocation2] sm:$0xff]
      %v86 = vlaneseq
      %v87 = vshrl.u32 %v86, 7
      %v88 = vsub.s32 0, %v87
      %v89 = vrot.slane %v83, %v88
      %v91 = vsub.f32 %v84, %v89
      %v92 = vmul.f32 %v91, %v91
      %v93 = vsel %vm67, %v92, 0.0
      %v94 = vrot.slane %v93, 4
      %v95 = vadd.f32 %v93, %v94
      %v96 = vrot.slane %v95, 2
      %v97 = vadd.f32 %v95, %v96
      %v98 = vrot.slane %v97, 1
      %v99 = vadd.f32 %v97, %v98
      %v100 = vmul.f32 %v99, 0.125
      %v101 = vadd.f32 %v100, 1e-05
      %v102 = vrsqrt.pop %v101
      %s103 = sld [smem:[#allocation4 + $0x1]]
      %s104 = sld [smem:[#allocation4 + $0x2]]
      %v105 = vmul.f32 %v91, %v102
      %v106 = vstv %s103
      %v107 = vmul.f32 %v105, %v106
      %v108 = vstv %s104
      %v109 = vadd.f32 %v107, %v108
      %110 = vst.msk [vmem:[%s3] sm:$0xff] %vm67, %v109
    $region29: #{tpu_custom_call.1} parent=1 // pred_fallthru
      _
    // Predicated region
    $region30: #{tpu_custom_call.1} parent=1 // pred_check
      _
    $region31: #{tpu_custom_call.1} parent=1 // pred_check_branch
      %112 = sbr.rel (0) target = $region33
    $region32: #{tpu_custom_call.1} parent=1 // pred_region
      _
    $region33: #{tpu_custom_call.1} parent=1 // pred_fallthru
      _
    // Predicated region
    $region34: #{tpu_custom_call.1} parent=1 // pred_check
      _
    $region35: #{tpu_custom_call.1} parent=1 // pred_check_branch
      %114 = sbr.rel (0) target = $region37
    $region36: #{tpu_custom_call.1} parent=1 // pred_region
      _
    $region37: #{tpu_custom_call.1} parent=1 // pred_fallthru
      _
    %115 = vsyncpa [#allocation5], 1
    %116 = vsyncpa [#allocation6], 1

</llo_original>
